<compile_context>
chip_gen: v7x
topology: tpu7x:2x2x1
jax: 0.10.0
libtpu: 0.0.40
codegen_flags: <defaults>
</compile_context>

<pallas_src>
import functools

import jax
import jax.numpy as jnp
from jax.experimental import pallas as pl
from jax.experimental.pallas import tpu as pltpu


def _round_up(x, m):
    return ((x + m - 1) // m) * m


def _vae_kernel(x_ref, eps_ref, w1_ref, w2_ref, whd_ref, w3_ref, w4_ref, b_ref,
                out_ref, *, d0, d1, d2):
    f32 = jnp.float32
    cdt = w1_ref.dtype                 # MXU operand dtype (f32 or bf16)
    tm = x_ref.shape[0]
    out_w = out_ref.shape[1]

    # ---- packed biases (kept f32 so the elementwise chain stays f32) ----
    b = b_ref[...]
    o = 0
    b1 = b[:, o:o + d1]; o += d1
    b2 = b[:, o:o + d2]; o += d2
    bhd = b[:, o:o + 2 * d2]; o += 2 * d2
    b3 = b[:, o:o + d1]; o += d1
    b4 = b[:, o:o + d0]

    x = x_ref[...].astype(cdt)

    # ---- encoder: Linear + ReLU, Linear + LeakyReLU(0.01) ----
    h = jnp.dot(x, w1_ref[...], preferred_element_type=f32) + b1
    h = jnp.maximum(h, 0.0)
    h = jnp.dot(h.astype(cdt), w2_ref[...], preferred_element_type=f32) + b2
    h = jnp.maximum(h, 0.01 * h)       # LeakyReLU == max(h, 0.01*h)

    # ---- fused mu | log_var heads (one (d2, 2*d2) matmul) ----
    mulv = jnp.dot(h.astype(cdt), whd_ref[...], preferred_element_type=f32) + bhd
    mu = mulv[:, :d2]
    lv = mulv[:, d2:]

    # ---- reparametrize: mu + exp(0.5*log_var) * eps ----
    z = mu + jnp.exp(0.5 * lv) * eps_ref[...]

    # ---- decoder: Linear + ReLU, Linear + Tanh ----
    d = jnp.dot(z.astype(cdt), w3_ref[...], preferred_element_type=f32) + b3
    d = jnp.maximum(d, 0.0)
    d = jnp.tanh(jnp.dot(d.astype(cdt), w4_ref[...], preferred_element_type=f32) + b4)

    # ---- single lane-dense packed output: [mu | log_var | recon | 0-pad] ----
    out_ref[:, 0:2 * d2] = mulv
    out_ref[:, 2 * d2:2 * d2 + d0] = d
    pad = out_w - (2 * d2 + d0)
    if pad > 0:
        out_ref[:, 2 * d2 + d0:] = jnp.zeros((tm, pad), f32)


def vae_forward_batched(x, eps, params, *, matmul_dtype=jnp.float32):
    """Batched VAE forward.  x: (B, d0), eps: (B, d2).  Returns (mu, lv, recon)."""
    (w1, b1, w2, b2, wmu, bmu, wlv, blv, w3, b3, w4, b4) = params
    d0, d1 = w1.shape
    d2 = w2.shape[1]
    B = x.shape[0]

    # fuse the two heads; pack all biases into one buffer
    whd = jnp.concatenate([wmu, wlv], axis=1)                           # (d2, 2*d2)
    bpk = jnp.concatenate(
        [b1, b2, jnp.concatenate([bmu, blv], axis=1), b3, b4], axis=1
    ).astype(jnp.float32)                                               # (1, 2*d1+3*d2+d0)

    cast = lambda w: w.astype(matmul_dtype)
    w1c, w2c, whdc, w3c, w4c = map(cast, (w1, w2, whd, w3, w4))

    # batch tiling: tm = 128 once B >= 128 (one full MXU pass), else round to 8
    tm = 128 if B >= 128 else _round_up(B, 8)
    b_pad = _round_up(B, tm)
    xp = jnp.zeros((b_pad, d0), jnp.float32).at[:B].set(x.astype(jnp.float32))
    ep = jnp.zeros((b_pad, d2), jnp.float32).at[:B].set(eps.astype(jnp.float32))

    out_w = max(128, _round_up(2 * d2 + d0, 128))
    grid = (b_pad // tm,)

    operands = (xp, ep, w1c, w2c, whdc, w3c, w4c, bpk)
    itemsz = lambda a: a.size * a.dtype.itemsize
    flops = 2 * b_pad * (d0 * d1 + d1 * d2 + d2 * (2 * d2) + d2 * d1 + d1 * d0)
    transcendentals = b_pad * (d2 + d0)                 # exp + tanh
    bytes_accessed = sum(itemsz(a) for a in operands) + b_pad * out_w * 4

    const2d = lambda shape: pl.BlockSpec(shape, lambda i: (0, 0))       # weight-resident

    kernel = functools.partial(_vae_kernel, d0=d0, d1=d1, d2=d2)
    packed = pl.pallas_call(
        kernel,
        out_shape=jax.ShapeDtypeStruct((b_pad, out_w), jnp.float32),
        grid_spec=pltpu.PrefetchScalarGridSpec(
            num_scalar_prefetch=0,
            grid=grid,
            in_specs=[
                pl.BlockSpec((tm, d0), lambda i: (i, 0)),               # x tile
                pl.BlockSpec((tm, d2), lambda i: (i, 0)),               # eps tile
                const2d(w1c.shape),
                const2d(w2c.shape),
                const2d(whdc.shape),
                const2d(w3c.shape),
                const2d(w4c.shape),
                const2d(bpk.shape),
            ],
            out_specs=pl.BlockSpec((tm, out_w), lambda i: (i, 0)),      # lane-dense slab
        ),
        compiler_params=pltpu.CompilerParams(dimension_semantics=("parallel",)),
        cost_estimate=pl.CostEstimate(flops=flops,
                                      transcendentals=transcendentals,
                                      bytes_accessed=bytes_accessed),
    )(*operands)

    mu = packed[:B, 0:d2]
    lv = packed[:B, d2:2 * d2]
    recon = packed[:B, 2 * d2:2 * d2 + d0]
    return mu, lv, recon


def vae_forward(x, eps, params, *, matmul_dtype=jnp.float32):
    """Original module semantics: x.view(1, -1) -> (mu, log_var, recon)."""
    d0 = params[0].shape[0]
    d2 = params[2].shape[1]
    x_row = x.reshape(1, -1)
    assert x_row.shape[1] == d0
    return vae_forward_batched(x_row, eps.reshape(1, d2), params,
                               matmul_dtype=matmul_dtype)


# ----------------------------- reference & init ------------------------------

def vae_reference_batched(xb, epsb, params):
    (w1, b1, w2, b2, wmu, bmu, wlv, blv, w3, b3, w4, b4) = params
    h = jnp.maximum(xb @ w1 + b1, 0.0)
    h = xb2 = h @ w2 + b2
    h = jnp.where(h > 0.0, h, 0.01 * h)
    mu = h @ wmu + bmu
    lv = h @ wlv + blv
    z = mu + jnp.exp(0.5 * lv) * epsb
    d = jnp.maximum(z @ w3 + b3, 0.0)
    out = jnp.tanh(d @ w4 + b4)
    return mu, lv, out


def init_params(key, shapes):
    """PyTorch-style Linear init (uniform(+-1/sqrt(fan_in))), weights stored (in, out)."""
    d0, d1, d2 = shapes
    layer_dims = [(d0, d1), (d1, d2), (d2, d2), (d2, d2), (d2, d1), (d1, d0)]
    params = []
    keys = jax.random.split(key, len(layer_dims) * 2)
    for i, (fan_in, fan_out) in enumerate(layer_dims):
        bound = 1.0 / jnp.sqrt(fan_in)
        w = jax.random.uniform(keys[2 * i], (fan_in, fan_out), jnp.float32,
                               minval=-bound, maxval=bound)
        b = jax.random.uniform(keys[2 * i + 1], (1, fan_out), jnp.float32,
                               minval=-bound, maxval=bound)
        params += [w, b]
    return tuple(params)


if __name__ == "__main__":
    shapes = (64, 32, 16)   # kwargs['shapes'] = [in_features, hidden, latent]
    d0, d1, d2 = shapes
    key = jax.random.PRNGKey(0)
    k_param, k_x, k_eps, k_xb, k_epsb = jax.random.split(key, 5)

    params = init_params(k_param, shapes)

    # ---- 1) original module semantics: x.view(1, -1), f32 path ----
    x = jax.random.normal(k_x, (4, 16), jnp.float32)          # flattens to 64 feats
    eps = jax.random.normal(k_eps, (1, d2), jnp.float32)      # stand-in for randn_like

    fwd = jax.jit(lambda xx, ee: vae_forward(xx, ee, params))
    mu, log_var, recon = fwd(x, eps)
    jax.block_until_ready((mu, log_var, recon))

    mu_r, lv_r, rec_r = vae_reference_batched(x.reshape(1, -1), eps, params)
    assert mu.shape == (1, d2) and log_var.shape == (1, d2) and recon.shape == (1, d0)
    assert bool(jnp.all(jnp.isfinite(recon))) and bool(jnp.all(jnp.abs(recon) <= 1.0))
    assert bool(jnp.allclose(mu, mu_r, rtol=2e-2, atol=2e-2))
    assert bool(jnp.allclose(log_var, lv_r, rtol=2e-2, atol=2e-2))
    assert bool(jnp.allclose(recon, rec_r, rtol=2e-2, atol=2e-2))

    # ---- 2) batched path (fills the MXU), bf16 MXU operands + f32 accumulation ----
    B = 256
    xb = jax.random.normal(k_xb, (B, d0), jnp.float32)
    epsb = jax.random.normal(k_epsb, (B, d2), jnp.float32)

    fwd_b = jax.jit(lambda xx, ee: vae_forward_batched(
        xx, ee, params, matmul_dtype=jnp.bfloat16))
    mu_b, lv_b, rec_b = fwd_b(xb, epsb)
    jax.block_until_ready((mu_b, lv_b, rec_b))

    mu_br, lv_br, rec_br = vae_reference_batched(xb, epsb, params)
    assert mu_b.shape == (B, d2) and lv_b.shape == (B, d2) and rec_b.shape == (B, d0)
    assert bool(jnp.all(jnp.isfinite(rec_b))) and bool(jnp.all(jnp.abs(rec_b) <= 1.0))
    assert bool(jnp.allclose(mu_b, mu_br, rtol=1.5e-1, atol=1.5e-1))
    assert bool(jnp.allclose(lv_b, lv_br, rtol=1.5e-1, atol=1.5e-1))
    assert bool(jnp.allclose(rec_b, rec_br, rtol=1.5e-1, atol=1.5e-1))

    print("KERNEL_OK")
</pallas_src>

<mosaic_0001>
module attributes {stable_mosaic.version = 11 : i64} {
  func.func @_vae_kernel(%arg0: i32, %arg1: memref<8x64xf32, #tpu.memory_space<vmem>>, %arg2: memref<8x16xf32, #tpu.memory_space<vmem>>, %arg3: memref<64x32xf32, #tpu.memory_space<vmem>>, %arg4: memref<32x16xf32, #tpu.memory_space<vmem>>, %arg5: memref<16x32xf32, #tpu.memory_space<vmem>>, %arg6: memref<16x32xf32, #tpu.memory_space<vmem>>, %arg7: memref<32x64xf32, #tpu.memory_space<vmem>>, %arg8: memref<1x176xf32, #tpu.memory_space<vmem>>, %arg9: memref<8x128xf32, #tpu.memory_space<vmem>>) attributes {dimension_semantics = [#tpu.dimension_semantics<parallel>], iteration_bounds = array<i64: 1>, scalar_prefetch = 0 : i64, scratch_operands = 0 : i64, tpu.core_type = #tpu.core_type<tc>, window_params = [{transform_indices = @transform_0, window_bounds = array<i64: 8, 64>}, {transform_indices = @transform_1, window_bounds = array<i64: 8, 16>}, {pipeline_mode = #tpu.pipeline_mode<synchronous>, transform_indices = @transform_2, window_bounds = array<i64: 64, 32>}, {pipeline_mode = #tpu.pipeline_mode<synchronous>, transform_indices = @transform_3, window_bounds = array<i64: 32, 16>}, {pipeline_mode = #tpu.pipeline_mode<synchronous>, transform_indices = @transform_4, window_bounds = array<i64: 16, 32>}, {pipeline_mode = #tpu.pipeline_mode<synchronous>, transform_indices = @transform_5, window_bounds = array<i64: 16, 32>}, {pipeline_mode = #tpu.pipeline_mode<synchronous>, transform_indices = @transform_6, window_bounds = array<i64: 32, 64>}, {pipeline_mode = #tpu.pipeline_mode<synchronous>, transform_indices = @transform_7, window_bounds = array<i64: 1, 176>}, {transform_indices = @transform_8, window_bounds = array<i64: 8, 128>}]} {
    %c0 = arith.constant 0 : index
    %c0_0 = arith.constant 0 : index
    %0 = vector.load %arg8[%c0, %c0_0] : memref<1x176xf32, #tpu.memory_space<vmem>>, vector<1x176xf32>
    %1 = vector.extract_strided_slice %0 {offsets = [0, 0], sizes = [1, 32], strides = [1, 1]} : vector<1x176xf32> to vector<1x32xf32>
    %2 = vector.extract_strided_slice %0 {offsets = [0, 32], sizes = [1, 16], strides = [1, 1]} : vector<1x176xf32> to vector<1x16xf32>
    %3 = vector.extract_strided_slice %0 {offsets = [0, 48], sizes = [1, 32], strides = [1, 1]} : vector<1x176xf32> to vector<1x32xf32>
    %4 = vector.extract_strided_slice %0 {offsets = [0, 80], sizes = [1, 32], strides = [1, 1]} : vector<1x176xf32> to vector<1x32xf32>
    %5 = vector.extract_strided_slice %0 {offsets = [0, 112], sizes = [1, 64], strides = [1, 1]} : vector<1x176xf32> to vector<1x64xf32>
    %c0_1 = arith.constant 0 : index
    %c0_2 = arith.constant 0 : index
    %6 = vector.load %arg1[%c0_1, %c0_2] : memref<8x64xf32, #tpu.memory_space<vmem>>, vector<8x64xf32>
    %c0_3 = arith.constant 0 : index
    %c0_4 = arith.constant 0 : index
    %7 = vector.load %arg3[%c0_3, %c0_4] : memref<64x32xf32, #tpu.memory_space<vmem>>, vector<64x32xf32>
    %cst = arith.constant dense<0.000000e+00> : vector<8x32xf32>
    %8 = tpu.matmul %6, %7, %cst {dimension_numbers = #tpu.dot_dimension_numbers<[1], [0], [0], [1], [0, 0, 1, 1], [], []>} : vector<8x64xf32>, vector<64x32xf32>, vector<8x32xf32> -> vector<8x32xf32>
    %9 = vector.broadcast %1 : vector<1x32xf32> to vector<8x32xf32>
    %10 = arith.addf %8, %9 : vector<8x32xf32>
    %cst_5 = arith.constant 0.000000e+00 : f32
    %11 = vector.broadcast %cst_5 : f32 to vector<8x32xf32>
    %12 = arith.maximumf %10, %11 : vector<8x32xf32>
    %c0_6 = arith.constant 0 : index
    %c0_7 = arith.constant 0 : index
    %13 = vector.load %arg4[%c0_6, %c0_7] : memref<32x16xf32, #tpu.memory_space<vmem>>, vector<32x16xf32>
    %cst_8 = arith.constant dense<0.000000e+00> : vector<8x16xf32>
    %14 = tpu.matmul %12, %13, %cst_8 {dimension_numbers = #tpu.dot_dimension_numbers<[1], [0], [0], [1], [0, 0, 1, 1], [], []>} : vector<8x32xf32>, vector<32x16xf32>, vector<8x16xf32> -> vector<8x16xf32>
    %15 = vector.broadcast %2 : vector<1x16xf32> to vector<8x16xf32>
    %16 = arith.addf %14, %15 : vector<8x16xf32>
    %cst_9 = arith.constant 0.00999999977 : f32
    %17 = vector.broadcast %cst_9 : f32 to vector<8x16xf32>
    %18 = arith.mulf %17, %16 : vector<8x16xf32>
    %19 = arith.maximumf %16, %18 : vector<8x16xf32>
    %c0_10 = arith.constant 0 : index
    %c0_11 = arith.constant 0 : index
    %20 = vector.load %arg5[%c0_10, %c0_11] : memref<16x32xf32, #tpu.memory_space<vmem>>, vector<16x32xf32>
    %cst_12 = arith.constant dense<0.000000e+00> : vector<8x32xf32>
    %21 = tpu.matmul %19, %20, %cst_12 {dimension_numbers = #tpu.dot_dimension_numbers<[1], [0], [0], [1], [0, 0, 1, 1], [], []>} : vector<8x16xf32>, vector<16x32xf32>, vector<8x32xf32> -> vector<8x32xf32>
    %22 = vector.broadcast %3 : vector<1x32xf32> to vector<8x32xf32>
    %23 = arith.addf %21, %22 : vector<8x32xf32>
    %24 = vector.extract_strided_slice %23 {offsets = [0, 0], sizes = [8, 16], strides = [1, 1]} : vector<8x32xf32> to vector<8x16xf32>
    %25 = vector.extract_strided_slice %23 {offsets = [0, 16], sizes = [8, 16], strides = [1, 1]} : vector<8x32xf32> to vector<8x16xf32>
    %cst_13 = arith.constant 5.000000e-01 : f32
    %26 = vector.broadcast %cst_13 : f32 to vector<8x16xf32>
    %27 = arith.mulf %26, %25 : vector<8x16xf32>
    %28 = math.exp %27 : vector<8x16xf32>
    %c0_14 = arith.constant 0 : index
    %c0_15 = arith.constant 0 : index
    %29 = vector.load %arg2[%c0_14, %c0_15] : memref<8x16xf32, #tpu.memory_space<vmem>>, vector<8x16xf32>
    %30 = arith.mulf %28, %29 : vector<8x16xf32>
    %31 = arith.addf %24, %30 : vector<8x16xf32>
    %c0_16 = arith.constant 0 : index
    %c0_17 = arith.constant 0 : index
    %32 = vector.load %arg6[%c0_16, %c0_17] : memref<16x32xf32, #tpu.memory_space<vmem>>, vector<16x32xf32>
    %cst_18 = arith.constant dense<0.000000e+00> : vector<8x32xf32>
    %33 = tpu.matmul %31, %32, %cst_18 {dimension_numbers = #tpu.dot_dimension_numbers<[1], [0], [0], [1], [0, 0, 1, 1], [], []>} : vector<8x16xf32>, vector<16x32xf32>, vector<8x32xf32> -> vector<8x32xf32>
    %34 = vector.broadcast %4 : vector<1x32xf32> to vector<8x32xf32>
    %35 = arith.addf %33, %34 : vector<8x32xf32>
    %cst_19 = arith.constant 0.000000e+00 : f32
    %36 = vector.broadcast %cst_19 : f32 to vector<8x32xf32>
    %37 = arith.maximumf %35, %36 : vector<8x32xf32>
    %c0_20 = arith.constant 0 : index
    %c0_21 = arith.constant 0 : index
    %38 = vector.load %arg7[%c0_20, %c0_21] : memref<32x64xf32, #tpu.memory_space<vmem>>, vector<32x64xf32>
    %cst_22 = arith.constant dense<0.000000e+00> : vector<8x64xf32>
    %39 = tpu.matmul %37, %38, %cst_22 {dimension_numbers = #tpu.dot_dimension_numbers<[1], [0], [0], [1], [0, 0, 1, 1], [], []>} : vector<8x32xf32>, vector<32x64xf32>, vector<8x64xf32> -> vector<8x64xf32>
    %40 = vector.broadcast %5 : vector<1x64xf32> to vector<8x64xf32>
    %41 = arith.addf %39, %40 : vector<8x64xf32>
    %42 = math.tanh %41 : vector<8x64xf32>
    %c0_23 = arith.constant 0 : index
    %c0_24 = arith.constant 0 : index
    %43 = vector.load %arg9[%c0_23, %c0_24] : memref<8x128xf32, #tpu.memory_space<vmem>>, vector<8x32xf32>
    tpu.vector_store %arg9[%c0_23, %c0_24], %23 {strides = array<i32>} : memref<8x128xf32, #tpu.memory_space<vmem>>, vector<8x32xf32>,
    %c0_25 = arith.constant 0 : index
    %c32 = arith.constant 32 : index
    %44 = vector.load %arg9[%c0_25, %c32] : memref<8x128xf32, #tpu.memory_space<vmem>>, vector<8x64xf32>
    tpu.vector_store %arg9[%c0_25, %c32], %42 {strides = array<i32>} : memref<8x128xf32, #tpu.memory_space<vmem>>, vector<8x64xf32>,
    %cst_26 = arith.constant 0.000000e+00 : f32
    %45 = vector.broadcast %cst_26 : f32 to vector<8x32xf32>
    %c0_27 = arith.constant 0 : index
    %c96 = arith.constant 96 : index
    %46 = vector.load %arg9[%c0_27, %c96] : memref<8x128xf32, #tpu.memory_space<vmem>>, vector<8x32xf32>
    tpu.vector_store %arg9[%c0_27, %c96], %45 {strides = array<i32>} : memref<8x128xf32, #tpu.memory_space<vmem>>, vector<8x32xf32>,
    return
  }
  func.func @transform_0(%arg0: i32) -> (i32, i32) {
    %c0_i32 = arith.constant 0 : i32
    %c0_i32_0 = arith.constant 0 : i32
    return %arg0, %c0_i32 : i32, i32
  }
  func.func @transform_1(%arg0: i32) -> (i32, i32) {
    %c0_i32 = arith.constant 0 : i32
    %c0_i32_0 = arith.constant 0 : i32
    return %arg0, %c0_i32 : i32, i32
  }
  func.func @transform_2(%arg0: i32) -> (i32, i32) {
    %c0_i32 = arith.constant 0 : i32
    %c0_i32_0 = arith.constant 0 : i32
    %c0_i32_1 = arith.constant 0 : i32
    return %c0_i32, %c0_i32_0 : i32, i32
  }
  func.func @transform_3(%arg0: i32) -> (i32, i32) {
    %c0_i32 = arith.constant 0 : i32
    %c0_i32_0 = arith.constant 0 : i32
    %c0_i32_1 = arith.constant 0 : i32
    return %c0_i32, %c0_i32_0 : i32, i32
  }
  func.func @transform_4(%arg0: i32) -> (i32, i32) {
    %c0_i32 = arith.constant 0 : i32
    %c0_i32_0 = arith.constant 0 : i32
    %c0_i32_1 = arith.constant 0 : i32
    return %c0_i32, %c0_i32_0 : i32, i32
  }
  func.func @transform_5(%arg0: i32) -> (i32, i32) {
    %c0_i32 = arith.constant 0 : i32
    %c0_i32_0 = arith.constant 0 : i32
    %c0_i32_1 = arith.constant 0 : i32
    return %c0_i32, %c0_i32_0 : i32, i32
  }
  func.func @transform_6(%arg0: i32) -> (i32, i32) {
    %c0_i32 = arith.constant 0 : i32
    %c0_i32_0 = arith.constant 0 : i32
    %c0_i32_1 = arith.constant 0 : i32
    return %c0_i32, %c0_i32_0 : i32, i32
  }
  func.func @transform_7(%arg0: i32) -> (i32, i32) {
    %c0_i32 = arith.constant 0 : i32
    %c0_i32_0 = arith.constant 0 : i32
    %c0_i32_1 = arith.constant 0 : i32
    return %c0_i32, %c0_i32_0 : i32, i32
  }
  func.func @transform_8(%arg0: i32) -> (i32, i32) {
    %c0_i32 = arith.constant 0 : i32
    %c0_i32_0 = arith.constant 0 : i32
    return %arg0, %c0_i32 : i32, i32
  }
}

</mosaic_0001>

<llo_original>
// kernel: _lambda_.1
$region0: #{_lambda_.1}
  #allocation0 [shape = 'u32[]', space=smem, size = 0x4, offset = 0x4, fixed_abs, tag = 'smem constant byte address 0x4 - core index']
  #allocation1 [shape = 'u32[144,128]{1,0:T(1,128)}', space=vmem, size = 0x12000, scoped, tag = 'internal scratch']
  %s0 = inlined_call_operand.vmem [shape: f32[8,64], index: 0, kind: input, shape index: {}]
  %s1 = inlined_call_operand.vmem [shape: f32[8,16], index: 1, kind: input, shape index: {}]
  %s2 = inlined_call_operand.hbm [shape: f32[64,32], index: 2, kind: input, shape index: {}]
  %s3 = inlined_call_operand.hbm [shape: f32[32,16], index: 3, kind: input, shape index: {}]
  %s4 = inlined_call_operand.hbm [shape: f32[16,32], index: 4, kind: input, shape index: {}]
  %s5 = inlined_call_operand.vmem [shape: f32[16,32], index: 5, kind: input, shape index: {}]
  %s6 = inlined_call_operand.vmem [shape: f32[32,64], index: 6, kind: input, shape index: {}]
  %s7 = inlined_call_operand.vmem [shape: f32[1,176], index: 7, kind: input, shape index: {}]
  %s8 = inlined_call_operand.vmem [shape: f32[8,128], index: 8, kind: output, shape index: {}]
  %s9 = sld [smem:[#allocation0]]
  $region54: #{_lambda_.1} parent=0
    _
  %s11 = ssub.s32 1, %s9
  %s12 = scalar_select 0, %s11, %s9
  $region1: #{_lambda_.1} parent=0
    #allocation2 [shape = 'u8[32768]{0}', space=vmem, size = 0x8000, scoped, tag = 'input window, operand 2, single buffered']
    #allocation3 [shape = 's32[1]{0}', space=sflag, size = 0x4, scoped, tag = 'scoped memory for _lambda_.1']
    #allocation4 [shape = 'u8[16384]{0}', space=vmem, size = 0x4000, scoped, tag = 'input window, operand 3, single buffered']
    #allocation5 [shape = 's32[1]{0}', space=sflag, size = 0x4, scoped, tag = 'scoped memory for _lambda_.1']
    #allocation6 [shape = 'u8[8192]{0}', space=vmem, size = 0x2000, scoped, tag = 'input window, operand 4, single buffered']
    %13 = vsyncpa [#allocation3], 0
    %14 = vsyncpa [#allocation5], 0
    // Predicated region
    $region2: #{_lambda_.1} parent=1 // pred_check
      _
    $region3: #{_lambda_.1} parent=1 // pred_check_branch
      %16 = sbr.rel (0) target = $region5
    $region4: #{_lambda_.1} parent=1 // pred_region
      _
    $region5: #{_lambda_.1} parent=1 // pred_fallthru
      _
    // Predicated region
    $region6: #{_lambda_.1} parent=1 // pred_check
      _
    $region7: #{_lambda_.1} parent=1 // pred_check_branch
      %18 = sbr.rel (0) target = $region9
    $region8: #{_lambda_.1} parent=1 // pred_region
      _
    $region9: #{_lambda_.1} parent=1 // pred_fallthru
      _
    // Predicated region
    $region10: #{_lambda_.1} parent=1 // pred_check
      _
    $region11: #{_lambda_.1} parent=1 // pred_check_branch
      %20 = sbr.rel (0) target = $region13
    $region12: #{_lambda_.1} parent=1 // pred_region
      %s22 = ssub.s32 1024, 1024
      %23 = vsyncadd [#allocation3], %s22
      %s24 = sshll.u32 [#allocation2], 4
      %s25 = int_to_ptr.vmem [resolvable:$true] %s24
      %30 = dma.hbm_to_vmem [thread:$0]  %s2, 1024, %s25, [#allocation3], 128, 128, 8
    $region13: #{_lambda_.1} parent=1 // pred_fallthru
      _
    // Predicated region
    $region14: #{_lambda_.1} parent=1 // pred_check
      _
    $region15: #{_lambda_.1} parent=1 // pred_check_branch
      %32 = sbr.rel (0) target = $region17
    $region16: #{_lambda_.1} parent=1 // pred_region
      %s34 = ssub.s32 512, 512
      %35 = vsyncadd [#allocation5], %s34
      %s36 = sshll.u32 [#allocation4], 4
      %s37 = int_to_ptr.vmem [resolvable:$true] %s36
      %42 = dma.hbm_to_vmem [thread:$0]  %s3, 512, %s37, [#allocation5], 128, 128, 8
    $region17: #{_lambda_.1} parent=1 // pred_fallthru
      _
    // Predicated region
    $region18: #{_lambda_.1} parent=1 // pred_check
      _
    $region19: #{_lambda_.1} parent=1 // pred_check_branch
      %44 = sbr.rel (0) target = $region21
    $region20: #{_lambda_.1} parent=1 // pred_region
      %s46 = ssub.s32 256, 256
      %47 = vsyncadd [#allocation5], %s46
      %s48 = sshll.u32 [#allocation6], 4
      %s49 = int_to_ptr.vmem [resolvable:$true] %s48
      %54 = dma.hbm_to_vmem [thread:$0]  %s4, 256, %s49, [#allocation5], 128, 128, 8
    $region21: #{_lambda_.1} parent=1 // pred_fallthru
      _
    // Predicated region
    $region22: #{_lambda_.1} parent=1 // pred_check
      _
    $region23: #{_lambda_.1} parent=1 // pred_check_branch
      %56 = sbr.rel (0) target = $region25
    $region24: #{_lambda_.1} parent=1 // pred_region
      _
    $region25: #{_lambda_.1} parent=1 // pred_fallthru
      _
    // Predicated region
    $region26: #{_lambda_.1} parent=1 // pred_check
      _
    $region27: #{_lambda_.1} parent=1 // pred_check_branch
      %58 = sbr.rel (0) target = $region29
    $region28: #{_lambda_.1} parent=1 // pred_region
      _
    $region29: #{_lambda_.1} parent=1 // pred_fallthru
      _
    // Predicated region
    $region30: #{_lambda_.1} parent=1 // pred_check
      _
    $region31: #{_lambda_.1} parent=1 // pred_check_branch
      %60 = sbr.rel (0) target = $region33
    $region32: #{_lambda_.1} parent=1 // pred_region
      _
    $region33: #{_lambda_.1} parent=1 // pred_fallthru
      _
    // Predicated region
    $region34: #{_lambda_.1} parent=1 // pred_check
      _
    $region35: #{_lambda_.1} parent=1 // pred_check_branch
      %62 = sbr.rel (0) target = $region37
    $region36: #{_lambda_.1} parent=1 // pred_region
      %63 = dma.done [#allocation3], 1024
    $region37: #{_lambda_.1} parent=1 // pred_fallthru
      _
    // Predicated region
    $region38: #{_lambda_.1} parent=1 // pred_check
      _
    $region39: #{_lambda_.1} parent=1 // pred_check_branch
      %65 = sbr.rel (0) target = $region41
    $region40: #{_lambda_.1} parent=1 // pred_region
      %66 = dma.done [#allocation5], 512
    $region41: #{_lambda_.1} parent=1 // pred_fallthru
      _
    // Predicated region
    $region42: #{_lambda_.1} parent=1 // pred_check
      _
    $region43: #{_lambda_.1} parent=1 // pred_check_branch
      %68 = sbr.rel (0) target = $region45
    $region44: #{_lambda_.1} parent=1 // pred_region
      %69 = dma.done [#allocation5], 256
    $region45: #{_lambda_.1} parent=1 // pred_fallthru
      _
    %v70 = vld [vmem:[%s7] sm:$0x3]
    %v71 = vld [vmem:[%s0] sm:$0xff]
    %v72 = vld [vmem:[#allocation2] sm:$0xff]
    %v73 = vld [vmem:[#allocation2 + $0x8] sm:$0xff]
    %v74 = vld [vmem:[#allocation2 + $0x10] sm:$0xff]
    %v75 = vld [vmem:[#allocation2 + $0x18] sm:$0xff]
    %v76 = vld [vmem:[#allocation2 + $0x20] sm:$0xff]
    %v77 = vld [vmem:[#allocation2 + $0x28] sm:$0xff]
    %v78 = vld [vmem:[#allocation2 + $0x30] sm:$0xff]
    %v79 = vld [vmem:[#allocation2 + $0x38] sm:$0xff]
    %v81 = vlaneseq
    %v82 = vshrl.u32 %v81, 7
    %v83 = vsub.s32 0, %v82
    %v84 = vrot.slane %v70, %v83
    %vm86 = vcmask 523264
    %v88 = vsel %vm86, %v71, 0
    %90 = vmatprep.subr.mxu0 0.0
    %91 = vmatpush1.msra.mxu0 %v72
    %92 = vmatprep.subr.mxu0 0.0
    %93 = vmatpush1.msra.mxu0 %v73
    %94 = vmatprep.subr.mxu0 0.0
    %95 = vmatpush1.msra.mxu0 %v74
    %96 = vmatprep.subr.mxu0 0.0
    %97 = vmatpush1.msra.mxu0 %v75
    %98 = vmatprep.subr.mxu0 0.0
    %99 = vmatpush1.msra.mxu0 %v76
    %100 = vmatprep.subr.mxu0 0.0
    %101 = vmatpush1.msra.mxu0 %v77
    %102 = vmatprep.subr.mxu0 0.0
    %103 = vmatpush1.msra.mxu0 %v78
    %104 = vmatprep.subr.mxu0 0.0
    %105 = vmatpush1.msra.mxu0 %v79
    %106 = vmatprep.subr.mxu0 0.0
    %107 = vmatpush1.msra.mxu0 0.0
    %108 = vmatprep.subr.mxu0 0.0
    %109 = vmatpush1.msra.mxu0 0.0
    %110 = vmatprep.subr.mxu0 0.0
    %111 = vmatpush1.msra.mxu0 0.0
    %112 = vmatprep.subr.mxu0 0.0
    %113 = vmatpush1.msra.mxu0 0.0
    %114 = vmatprep.subr.mxu0 0.0
    %115 = vmatpush1.msra.mxu0 0.0
    %116 = vmatprep.subr.mxu0 0.0
    %117 = vmatpush1.msra.mxu0 0.0
    %118 = vmatprep.subr.mxu0 0.0
    %119 = vmatpush1.msra.mxu0 0.0
    %120 = vmatprep.subr.mxu0 0.0
    %121 = vmatpush1.msra.mxu0 0.0
    %122 = vmatprep.subr.mxu0 0.0
    %123 = vmatpush1.msra.mxu0 0.0
    %124 = vmatprep.subr.mxu0 0.0
    %125 = vmatpush1.msra.mxu0 0.0
    %126 = vmatprep.subr.mxu0 0.0
    %127 = vmatpush1.msra.mxu0 0.0
    %128 = vmatprep.subr.mxu0 0.0
    %129 = vmatpush1.msra.mxu0 0.0
    %130 = vmatprep.subr.mxu0 0.0
    %131 = vmatpush1.msra.mxu0 0.0
    %132 = vmatprep.subr.mxu0 0.0
    %133 = vmatpush1.msra.mxu0 0.0
    %134 = vmatprep.subr.mxu0 0.0
    %135 = vmatpush1.msra.mxu0 0.0
    %136 = vmatprep.subr.mxu0 0.0
    %137 = vmatpush1.msra.mxu0 0.0
    %138 = vmatprep.subr.mxu0 0.0
    %139 = vmatpush1.msra.mxu0 0.0
    %140 = vmatprep.subr.mxu0 0.0
    %141 = vmatpush1.msra.mxu0 0.0
    %142 = vmatprep.subr.mxu0 0.0
    %143 = vmatpush1.msra.mxu0 0.0
    %144 = vmatprep.subr.mxu0 0.0
    %145 = vmatpush1.msra.mxu0 0.0
    %146 = vmatprep.subr.mxu0 0.0
    %147 = vmatpush1.msra.mxu0 0.0
    %148 = vmatprep.subr.mxu0 0.0
    %149 = vmatpush1.msra.mxu0 0.0
    %150 = vmatprep.subr.mxu0 0.0
    %151 = vmatpush1.msra.mxu0 0.0
    %152 = vmatprep.subr.mxu0 0.0
    %153 = vmatpush1.msra.mxu0 0.0
    %154 = vmatprep.mubr.f32.mxu0 0.0
    %155 = vmatmul.mubr.f32.gmra.mrb[0].mxu0 %v88
    %v156 = vpop.f32.mrb[0].mxu0
    %v157 = vadd.f32 %v84, %v156
    %v158 = vpop.f32.mrb[0].mxu0
    %159 = vdwg.mxu0
    %v160 = vmax.f32 %v157, 0.0
    %v161 = vld [vmem:[#allocation4] sm:$0xff]
    %v162 = vld [vmem:[#allocation4 + $0x8] sm:$0xff]
    %v163 = vld [vmem:[#allocation4 + $0x10] sm:$0xff]
    %v164 = vld [vmem:[#allocation4 + $0x18] sm:$0xff]
    %165 = vrot.lane.b32.xlu0 %v84, 96
    %v166 = vpop.permute.xlu0 %165
    %vm168 = vcmask 261120
    %v170 = vsel %vm168, %v160, 0
    %172 = vmatprep.subr.mxu0 0.0
    %173 = vmatpush1.msra.mxu0 %v161
    %174 = vmatprep.subr.mxu0 0.0
    %175 = vmatpush1.msra.mxu0 %v162
    %176 = vmatprep.subr.mxu0 0.0
    %177 = vmatpush1.msra.mxu0 %v163
    %178 = vmatprep.subr.mxu0 0.0
    %179 = vmatpush1.msra.mxu0 %v164
    %180 = vmatprep.subr.mxu0 0.0
    %181 = vmatpush1.msra.mxu0 0.0
    %182 = vmatprep.subr.mxu0 0.0
    %183 = vmatpush1.msra.mxu0 0.0
    %184 = vmatprep.subr.mxu0 0.0
    %185 = vmatpush1.msra.mxu0 0.0
    %186 = vmatprep.subr.mxu0 0.0
    %187 = vmatpush1.msra.mxu0 0.0
    %188 = vmatprep.subr.mxu0 0.0
    %189 = vmatpush1.msra.mxu0 0.0
    %190 = vmatprep.subr.mxu0 0.0
    %191 = vmatpush1.msra.mxu0 0.0
    %192 = vmatprep.subr.mxu0 0.0
    %193 = vmatpush1.msra.mxu0 0.0
    %194 = vmatprep.subr.mxu0 0.0
    %195 = vmatpush1.msra.mxu0 0.0
    %196 = vmatprep.subr.mxu0 0.0
    %197 = vmatpush1.msra.mxu0 0.0
    %198 = vmatprep.subr.mxu0 0.0
    %199 = vmatpush1.msra.mxu0 0.0
    %200 = vmatprep.subr.mxu0 0.0
    %201 = vmatpush1.msra.mxu0 0.0
    %202 = vmatprep.subr.mxu0 0.0
    %203 = vmatpush1.msra.mxu0 0.0
    %204 = vmatprep.subr.mxu0 0.0
    %205 = vmatpush1.msra.mxu0 0.0
    %206 = vmatprep.subr.mxu0 0.0
    %207 = vmatpush1.msra.mxu0 0.0
    %208 = vmatprep.subr.mxu0 0.0
    %209 = vmatpush1.msra.mxu0 0.0
    %210 = vmatprep.subr.mxu0 0.0
    %211 = vmatpush1.msra.mxu0 0.0
    %212 = vmatprep.subr.mxu0 0.0
    %213 = vmatpush1.msra.mxu0 0.0
    %214 = vmatprep.subr.mxu0 0.0
    %215 = vmatpush1.msra.mxu0 0.0
    %216 = vmatprep.subr.mxu0 0.0
    %217 = vmatpush1.msra.mxu0 0.0
    %218 = vmatprep.subr.mxu0 0.0
    %219 = vmatpush1.msra.mxu0 0.0
    %220 = vmatprep.subr.mxu0 0.0
    %221 = vmatpush1.msra.mxu0 0.0
    %222 = vmatprep.subr.mxu0 0.0
    %223 = vmatpush1.msra.mxu0 0.0
    %224 = vmatprep.subr.mxu0 0.0
    %225 = vmatpush1.msra.mxu0 0.0
    %226 = vmatprep.subr.mxu0 0.0
    %227 = vmatpush1.msra.mxu0 0.0
    %228 = vmatprep.subr.mxu0 0.0
    %229 = vmatpush1.msra.mxu0 0.0
    %230 = vmatprep.subr.mxu0 0.0
    %231 = vmatpush1.msra.mxu0 0.0
    %232 = vmatprep.subr.mxu0 0.0
    %233 = vmatpush1.msra.mxu0 0.0
    %234 = vmatprep.subr.mxu0 0.0
    %235 = vmatpush1.msra.mxu0 0.0
    %236 = vmatprep.mubr.f32.mxu0 0.0
    %237 = vmatmul.mubr.f32.gmra.mrb[0].mxu0 %v170
    %v238 = vpop.f32.mrb[0].mxu0
    %v239 = vadd.f32 %v166, %v238
    %v240 = vpop.f32.mrb[0].mxu0
    %241 = vdwg.mxu0
    %v242 = vmul.f32 %v239, 0.01
    %v243 = vmax.f32 %v239, %v242
    %v244 = vld [vmem:[#allocation6] sm:$0xff]
    %v245 = vld [vmem:[#allocation6 + $0x8] sm:$0xff]
    %246 = vrot.lane.b32.xlu0 %v84, 80
    %v247 = vpop.permute.xlu0 %246
    %vm249 = vcmask 130048
    %v251 = vsel %vm249, %v243, 0
    %253 = vmatprep.subr.mxu0 0.0
    %254 = vmatpush1.msra.mxu0 %v244
    %255 = vmatprep.subr.mxu0 0.0
    %256 = vmatpush1.msra.mxu0 %v245
    %257 = vmatprep.subr.mxu0 0.0
    %258 = vmatpush1.msra.mxu0 0.0
    %259 = vmatprep.subr.mxu0 0.0
    %260 = vmatpush1.msra.mxu0 0.0
    %261 = vmatprep.subr.mxu0 0.0
    %262 = vmatpush1.msra.mxu0 0.0
    %263 = vmatprep.subr.mxu0 0.0
    %264 = vmatpush1.msra.mxu0 0.0
    %265 = vmatprep.subr.mxu0 0.0
    %266 = vmatpush1.msra.mxu0 0.0
    %267 = vmatprep.subr.mxu0 0.0
    %268 = vmatpush1.msra.mxu0 0.0
    %269 = vmatprep.subr.mxu0 0.0
    %270 = vmatpush1.msra.mxu0 0.0
    %271 = vmatprep.subr.mxu0 0.0
    %272 = vmatpush1.msra.mxu0 0.0
    %273 = vmatprep.subr.mxu0 0.0
    %274 = vmatpush1.msra.mxu0 0.0
    %275 = vmatprep.subr.mxu0 0.0
    %276 = vmatpush1.msra.mxu0 0.0
    %277 = vmatprep.subr.mxu0 0.0
    %278 = vmatpush1.msra.mxu0 0.0
    %279 = vmatprep.subr.mxu0 0.0
    %280 = vmatpush1.msra.mxu0 0.0
    %281 = vmatprep.subr.mxu0 0.0
    %282 = vmatpush1.msra.mxu0 0.0
    %283 = vmatprep.subr.mxu0 0.0
    %284 = vmatpush1.msra.mxu0 0.0
    %285 = vmatprep.subr.mxu0 0.0
    %286 = vmatpush1.msra.mxu0 0.0
    %287 = vmatprep.subr.mxu0 0.0
    %288 = vmatpush1.msra.mxu0 0.0
    %289 = vmatprep.subr.mxu0 0.0
    %290 = vmatpush1.msra.mxu0 0.0
    %291 = vmatprep.subr.mxu0 0.0
    %292 = vmatpush1.msra.mxu0 0.0
    %293 = vmatprep.subr.mxu0 0.0
    %294 = vmatpush1.msra.mxu0 0.0
    %295 = vmatprep.subr.mxu0 0.0
    %296 = vmatpush1.msra.mxu0 0.0
    %297 = vmatprep.subr.mxu0 0.0
    %298 = vmatpush1.msra.mxu0 0.0
    %299 = vmatprep.subr.mxu0 0.0
    %300 = vmatpush1.msra.mxu0 0.0
    %301 = vmatprep.subr.mxu0 0.0
    %302 = vmatpush1.msra.mxu0 0.0
    %303 = vmatprep.subr.mxu0 0.0
    %304 = vmatpush1.msra.mxu0 0.0
    %305 = vmatprep.subr.mxu0 0.0
    %306 = vmatpush1.msra.mxu0 0.0
    %307 = vmatprep.subr.mxu0 0.0
    %308 = vmatpush1.msra.mxu0 0.0
    %309 = vmatprep.subr.mxu0 0.0
    %310 = vmatpush1.msra.mxu0 0.0
    %311 = vmatprep.subr.mxu0 0.0
    %312 = vmatpush1.msra.mxu0 0.0
    %313 = vmatprep.subr.mxu0 0.0
    %314 = vmatpush1.msra.mxu0 0.0
    %315 = vmatprep.subr.mxu0 0.0
    %316 = vmatpush1.msra.mxu0 0.0
    %317 = vmatprep.mubr.f32.mxu0 0.0
    %318 = vmatmul.mubr.f32.gmra.mrb[0].mxu0 %v251
    %v319 = vpop.f32.mrb[0].mxu0
    %v320 = vadd.f32 %v247, %v319
    %v321 = vpop.f32.mrb[0].mxu0
    %322 = vdwg.mxu0
    %v323 = vmul.f32 %v320, 0.5
    %v324 = vmul.f32 %v323, 1.442695
    %v325 = vpow.pop %v324
    %v326 = vld [vmem:[%s1] sm:$0xff]
    %328 = vrot.lane.b32.xlu0 %v326, 16
    %v329 = vpop.permute.xlu0 %328
    %v331 = vmul.f32 %v325, %v329
    %333 = vrot.lane.b32.xlu0 %v331, 112
    %v334 = vpop.permute.xlu0 %333
    %v336 = vadd.f32 %v320, %v334
    %v337 = vld [vmem:[%s5] sm:$0xff]
    %v338 = vld [vmem:[%s5 + $0x8] sm:$0xff]
    %339 = vrot.lane.b32.xlu0 %v84, 48
    %v340 = vpop.permute.xlu0 %339
    %v343 = vsel %vm249, %v336, 0
    %345 = vmatprep.subr.mxu0 0.0
    %346 = vmatpush1.msra.mxu0 %v337
    %347 = vmatprep.subr.mxu0 0.0
    %348 = vmatpush1.msra.mxu0 %v338
    %349 = vmatprep.subr.mxu0 0.0
    %350 = vmatpush1.msra.mxu0 0.0
    %351 = vmatprep.subr.mxu0 0.0
    %352 = vmatpush1.msra.mxu0 0.0
    %353 = vmatprep.subr.mxu0 0.0
    %354 = vmatpush1.msra.mxu0 0.0
    %355 = vmatprep.subr.mxu0 0.0
    %356 = vmatpush1.msra.mxu0 0.0
    %357 = vmatprep.subr.mxu0 0.0
    %358 = vmatpush1.msra.mxu0 0.0
    %359 = vmatprep.subr.mxu0 0.0
    %360 = vmatpush1.msra.mxu0 0.0
    %361 = vmatprep.subr.mxu0 0.0
    %362 = vmatpush1.msra.mxu0 0.0
    %363 = vmatprep.subr.mxu0 0.0
    %364 = vmatpush1.msra.mxu0 0.0
    %365 = vmatprep.subr.mxu0 0.0
    %366 = vmatpush1.msra.mxu0 0.0
    %367 = vmatprep.subr.mxu0 0.0
    %368 = vmatpush1.msra.mxu0 0.0
    %369 = vmatprep.subr.mxu0 0.0
    %370 = vmatpush1.msra.mxu0 0.0
    %371 = vmatprep.subr.mxu0 0.0
    %372 = vmatpush1.msra.mxu0 0.0
    %373 = vmatprep.subr.mxu0 0.0
    %374 = vmatpush1.msra.mxu0 0.0
    %375 = vmatprep.subr.mxu0 0.0
    %376 = vmatpush1.msra.mxu0 0.0
    %377 = vmatprep.subr.mxu0 0.0
    %378 = vmatpush1.msra.mxu0 0.0
    %379 = vmatprep.subr.mxu0 0.0
    %380 = vmatpush1.msra.mxu0 0.0
    %381 = vmatprep.subr.mxu0 0.0
    %382 = vmatpush1.msra.mxu0 0.0
    %383 = vmatprep.subr.mxu0 0.0
    %384 = vmatpush1.msra.mxu0 0.0
    %385 = vmatprep.subr.mxu0 0.0
    %386 = vmatpush1.msra.mxu0 0.0
    %387 = vmatprep.subr.mxu0 0.0
    %388 = vmatpush1.msra.mxu0 0.0
    %389 = vmatprep.subr.mxu0 0.0
    %390 = vmatpush1.msra.mxu0 0.0
    %391 = vmatprep.subr.mxu0 0.0
    %392 = vmatpush1.msra.mxu0 0.0
    %393 = vmatprep.subr.mxu0 0.0
    %394 = vmatpush1.msra.mxu0 0.0
    %395 = vmatprep.subr.mxu0 0.0
    %396 = vmatpush1.msra.mxu0 0.0
    %397 = vmatprep.subr.mxu0 0.0
    %398 = vmatpush1.msra.mxu0 0.0
    %399 = vmatprep.subr.mxu0 0.0
    %400 = vmatpush1.msra.mxu0 0.0
    %401 = vmatprep.subr.mxu0 0.0
    %402 = vmatpush1.msra.mxu0 0.0
    %403 = vmatprep.subr.mxu0 0.0
    %404 = vmatpush1.msra.mxu0 0.0
    %405 = vmatprep.subr.mxu0 0.0
    %406 = vmatpush1.msra.mxu0 0.0
    %407 = vmatprep.subr.mxu0 0.0
    %408 = vmatpush1.msra.mxu0 0.0
    %409 = vmatprep.mubr.f32.mxu0 0.0
    %410 = vmatmul.mubr.f32.gmra.mrb[0].mxu0 %v343
    %v411 = vpop.f32.mrb[0].mxu0
    %v412 = vadd.f32 %v340, %v411
    %v413 = vpop.f32.mrb[0].mxu0
    %414 = vdwg.mxu0
    %v415 = vmax.f32 %v412, 0.0
    %v416 = vld [vmem:[%s6] sm:$0xff]
    %v417 = vld [vmem:[%s6 + $0x8] sm:$0xff]
    %v418 = vld [vmem:[%s6 + $0x10] sm:$0xff]
    %v419 = vld [vmem:[%s6 + $0x18] sm:$0xff]
    %v420 = vlaneseq
    %v421 = vshrl.u32 %v420, 7
    %v422 = vsub.s32 1, %v421
    %v423 = vrot.slane %v70, %v422
    %424 = vrot.lane.b32.xlu0 %v84, 16
    %v425 = vpop.permute.xlu0 %424
    %426 = vrot.lane.b32.xlu0 %v423, 16
    %v427 = vpop.permute.xlu0 %426
    %v428 = vsel %vm249, %v425, %v427
    %v431 = vsel %vm168, %v415, 0
    %433 = vmatprep.subr.mxu0 0.0
    %434 = vmatpush1.msra.mxu0 %v416
    %435 = vmatprep.subr.mxu0 0.0
    %436 = vmatpush1.msra.mxu0 %v417
    %437 = vmatprep.subr.mxu0 0.0
    %438 = vmatpush1.msra.mxu0 %v418
    %439 = vmatprep.subr.mxu0 0.0
    %440 = vmatpush1.msra.mxu0 %v419
    %441 = vmatprep.subr.mxu0 0.0
    %442 = vmatpush1.msra.mxu0 0.0
    %443 = vmatprep.subr.mxu0 0.0
    %444 = vmatpush1.msra.mxu0 0.0
    %445 = vmatprep.subr.mxu0 0.0
    %446 = vmatpush1.msra.mxu0 0.0
    %447 = vmatprep.subr.mxu0 0.0
    %448 = vmatpush1.msra.mxu0 0.0
    %449 = vmatprep.subr.mxu0 0.0
    %450 = vmatpush1.msra.mxu0 0.0
    %451 = vmatprep.subr.mxu0 0.0
    %452 = vmatpush1.msra.mxu0 0.0
    %453 = vmatprep.subr.mxu0 0.0
    %454 = vmatpush1.msra.mxu0 0.0
    %455 = vmatprep.subr.mxu0 0.0
    %456 = vmatpush1.msra.mxu0 0.0
    %457 = vmatprep.subr.mxu0 0.0
    %458 = vmatpush1.msra.mxu0 0.0
    %459 = vmatprep.subr.mxu0 0.0
    %460 = vmatpush1.msra.mxu0 0.0
    %461 = vmatprep.subr.mxu0 0.0
    %462 = vmatpush1.msra.mxu0 0.0
    %463 = vmatprep.subr.mxu0 0.0
    %464 = vmatpush1.msra.mxu0 0.0
    %465 = vmatprep.subr.mxu0 0.0
    %466 = vmatpush1.msra.mxu0 0.0
    %467 = vmatprep.subr.mxu0 0.0
    %468 = vmatpush1.msra.mxu0 0.0
    %469 = vmatprep.subr.mxu0 0.0
    %470 = vmatpush1.msra.mxu0 0.0
    %471 = vmatprep.subr.mxu0 0.0
    %472 = vmatpush1.msra.mxu0 0.0
    %473 = vmatprep.subr.mxu0 0.0
    %474 = vmatpush1.msra.mxu0 0.0
    %475 = vmatprep.subr.mxu0 0.0
    %476 = vmatpush1.msra.mxu0 0.0
    %477 = vmatprep.subr.mxu0 0.0
    %478 = vmatpush1.msra.mxu0 0.0
    %479 = vmatprep.subr.mxu0 0.0
    %480 = vmatpush1.msra.mxu0 0.0
    %481 = vmatprep.subr.mxu0 0.0
    %482 = vmatpush1.msra.mxu0 0.0
    %483 = vmatprep.subr.mxu0 0.0
    %484 = vmatpush1.msra.mxu0 0.0
    %485 = vmatprep.subr.mxu0 0.0
    %486 = vmatpush1.msra.mxu0 0.0
    %487 = vmatprep.subr.mxu0 0.0
    %488 = vmatpush1.msra.mxu0 0.0
    %489 = vmatprep.subr.mxu0 0.0
    %490 = vmatpush1.msra.mxu0 0.0
    %491 = vmatprep.subr.mxu0 0.0
    %492 = vmatpush1.msra.mxu0 0.0
    %493 = vmatprep.subr.mxu0 0.0
    %494 = vmatpush1.msra.mxu0 0.0
    %495 = vmatprep.subr.mxu0 0.0
    %496 = vmatpush1.msra.mxu0 0.0
    %497 = vmatprep.mubr.f32.mxu0 0.0
    %498 = vmatmul.mubr.f32.gmra.mrb[0].mxu0 %v431
    %v499 = vpop.f32.mrb[0].mxu0
    %v500 = vadd.f32 %v428, %v499
    %v501 = vpop.f32.mrb[0].mxu0
    %502 = vdwg.mxu0
    %v503 = vtanh.pop %v500
    %504 = vst.msk [vmem:[%s8] sm:$0xff] %vm168, %v320
    %506 = vrot.lane.b32.xlu0 %v503, 32
    %v507 = vpop.permute.xlu0 %506
    %vm509 = vcmask 785664
    %510 = vst.msk [vmem:[%s8] sm:$0xff] %vm509, %v507
    %vm511 = vcmask 1048320
    %512 = vst.msk [vmem:[%s8] sm:$0xff] %vm511, 0.0
    // Predicated region
    $region46: #{_lambda_.1} parent=1 // pred_check
      _
    $region47: #{_lambda_.1} parent=1 // pred_check_branch
      %514 = sbr.rel (0) target = $region49
    $region48: #{_lambda_.1} parent=1 // pred_region
      _
    $region49: #{_lambda_.1} parent=1 // pred_fallthru
      _
    // Predicated region
    $region50: #{_lambda_.1} parent=1 // pred_check
      _
    $region51: #{_lambda_.1} parent=1 // pred_check_branch
      %516 = sbr.rel (0) target = $region53
    $region52: #{_lambda_.1} parent=1 // pred_region
      _
    $region53: #{_lambda_.1} parent=1 // pred_fallthru
      _
    %517 = vsyncpa [#allocation3], 1
    %518 = vsyncpa [#allocation5], 1

</llo_original>
